<compile_context>
chip_gen: v7x
topology: tpu7x:2x2x1
jax: 0.10.0
libtpu: 0.0.40
codegen_flags: <defaults>
</compile_context>

<pallas_src>
import jax
import jax.numpy as jnp
from jax.experimental import pallas as pl
from jax.experimental.pallas import tpu as pltpu


def qnet_kernel(state_ref, action_ref, th6_ref, th7_ref, th5s_ref, th5a_ref, out_ref):
    s = state_ref[...]           # (P, TB)  state^T tile (batch on lanes)
    a = action_ref[...]          # (P, TB)  action^T tile
    th6 = th6_ref[...]           # (P, P)
    th7 = th7_ref[...]           # (P, P)
    th5_s = th5s_ref[...]        # (P, 1)   theta_5[:, :P] as a column
    th5_a = th5a_ref[...]        # (P, 1)   theta_5[:, P:] as a column

    # mixed[i, b] = sum_j theta[i, j] * x[b, j]  ==  theta @ x^T  (batch on N axis).
    ms = jnp.dot(th6, s, preferred_element_type=jnp.float32)    # (P, TB)
    ma = jnp.dot(th7, a, preferred_element_type=jnp.float32)    # (P, TB)

    # relu(cat([ms, ma])) == cat([relu(ms), relu(ma)]); the 1-wide theta_5
    # projection becomes a lane-broadcast multiply + sublane reduction (VPU),
    # no cross-lane XLU reduce and no degenerate MXU matmul.
    ms = jnp.maximum(ms, 0.0)
    ma = jnp.maximum(ma, 0.0)
    out = jnp.sum(ms * th5_s + ma * th5_a, axis=0, keepdims=True)   # (1, TB)
    out_ref[...] = out.astype(out_ref.dtype)


def qnet_forward(state, action, theta_6, theta_7, theta_5, *, block_b=8192):
    """state/action: (B, P) f32; theta_6/theta_7: (P, P); theta_5: (1, 2P)."""
    B, P = state.shape

    # Split theta_5 once in the wrapper into (P, 1) columns (lane-broadcastable).
    th5_s = theta_5[:, :P].reshape(P, 1)
    th5_a = theta_5[:, P:].reshape(P, 1)

    # Batch tile: multiple of 128 (batch sits on the lane axis), capped at block_b.
    tb = min(block_b, B)
    tb = max(128, ((tb + 127) // 128) * 128)
    b_padded = pl.cdiv(B, tb) * tb

    # Pre-transpose to (P, B) so batch maps to the MXU N / lane axis; pad lanes so
    # the grid divides evenly (padded columns give zeros and are sliced off).
    pad = b_padded - B
    state_t = jnp.pad(jnp.transpose(state), ((0, 0), (0, pad)))
    action_t = jnp.pad(jnp.transpose(action), ((0, 0), (0, pad)))

    grid = (b_padded // tb,)

    out = pl.pallas_call(
        qnet_kernel,
        out_shape=jax.ShapeDtypeStruct((1, b_padded), jnp.float32),
        grid_spec=pltpu.PrefetchScalarGridSpec(
            num_scalar_prefetch=0,
            grid=grid,
            in_specs=[
                pl.BlockSpec((P, tb), lambda i: (0, i)),   # state^T tile
                pl.BlockSpec((P, tb), lambda i: (0, i)),   # action^T tile
                pl.BlockSpec((P, P), lambda i: (0, 0)),    # theta_6 (resident)
                pl.BlockSpec((P, P), lambda i: (0, 0)),    # theta_7 (resident)
                pl.BlockSpec((P, 1), lambda i: (0, 0)),    # theta_5 state half
                pl.BlockSpec((P, 1), lambda i: (0, 0)),    # theta_5 action half
            ],
            out_specs=pl.BlockSpec((1, tb), lambda i: (0, i)),   # lane-dense output
        ),
        compiler_params=pltpu.CompilerParams(
            dimension_semantics=("parallel",),
        ),
    )(state_t, action_t, theta_6, theta_7, th5_s, th5_a)

    return out[0, :B].reshape(B, 1)


def qnet_reference(state, action, theta_6, theta_7, theta_5):
    mixed_state = jnp.einsum("ij,bj->bi", theta_6, state)
    mixed_action = jnp.einsum("ij,bj->bi", theta_7, action)
    sa = jnp.concatenate([mixed_state, mixed_action], axis=-1)
    return jnp.einsum("oj,bj->bo", theta_5, jax.nn.relu(sa))


if __name__ == "__main__":
    embed_dim = 32
    batch = 4

    key = jax.random.PRNGKey(0)
    k5, k6, k7, ks, ka = jax.random.split(key, 5)

    # Deterministic parameter init matching torch.rand (uniform [0, 1)) shapes.
    theta_5 = jax.random.uniform(k5, (1, 2 * embed_dim), dtype=jnp.float32)
    theta_6 = jax.random.uniform(k6, (embed_dim, embed_dim), dtype=jnp.float32)
    theta_7 = jax.random.uniform(k7, (embed_dim, embed_dim), dtype=jnp.float32)

    state = jax.random.normal(ks, (batch, embed_dim), dtype=jnp.float32)
    action = jax.random.normal(ka, (batch, embed_dim), dtype=jnp.float32)

    out = qnet_forward(state, action, theta_6, theta_7, theta_5)
    out = jax.block_until_ready(out)
    ref = qnet_reference(state, action, theta_6, theta_7, theta_5)
    assert out.shape == (batch, 1), out.shape
    assert jnp.allclose(out, ref, atol=1e-4, rtol=1e-4), (out, ref)

    # Secondary check: multiple grid steps + batch padding (small, fast shapes).
    big_b = 300
    ks2, ka2 = jax.random.split(jax.random.PRNGKey(1))
    state_b = jax.random.normal(ks2, (big_b, embed_dim), dtype=jnp.float32)
    action_b = jax.random.normal(ka2, (big_b, embed_dim), dtype=jnp.float32)
    out_b = qnet_forward(state_b, action_b, theta_6, theta_7, theta_5, block_b=128)
    out_b = jax.block_until_ready(out_b)
    ref_b = qnet_reference(state_b, action_b, theta_6, theta_7, theta_5)
    assert out_b.shape == (big_b, 1), out_b.shape
    assert jnp.allclose(out_b, ref_b, atol=1e-4, rtol=1e-4)

    print("KERNEL_OK")
</pallas_src>

<mosaic_0001>
module attributes {stable_mosaic.version = 11 : i64} {
  func.func @qnet_kernel(%arg0: i32, %arg1: memref<32x128xf32, #tpu.memory_space<vmem>>, %arg2: memref<32x128xf32, #tpu.memory_space<vmem>>, %arg3: memref<32x32xf32, #tpu.memory_space<vmem>>, %arg4: memref<32x32xf32, #tpu.memory_space<vmem>>, %arg5: memref<32x1xf32, #tpu.memory_space<vmem>>, %arg6: memref<32x1xf32, #tpu.memory_space<vmem>>, %arg7: memref<1x128xf32, #tpu.memory_space<vmem>>) attributes {dimension_semantics = [#tpu.dimension_semantics<parallel>], iteration_bounds = array<i64: 1>, scalar_prefetch = 0 : i64, scratch_operands = 0 : i64, tpu.core_type = #tpu.core_type<tc>, window_params = [{transform_indices = @transform_0, window_bounds = array<i64: 32, 128>}, {transform_indices = @transform_1, window_bounds = array<i64: 32, 128>}, {pipeline_mode = #tpu.pipeline_mode<synchronous>, transform_indices = @transform_2, window_bounds = array<i64: 32, 32>}, {pipeline_mode = #tpu.pipeline_mode<synchronous>, transform_indices = @transform_3, window_bounds = array<i64: 32, 32>}, {pipeline_mode = #tpu.pipeline_mode<synchronous>, transform_indices = @transform_4, window_bounds = array<i64: 32, 1>}, {pipeline_mode = #tpu.pipeline_mode<synchronous>, transform_indices = @transform_5, window_bounds = array<i64: 32, 1>}, {transform_indices = @transform_6, window_bounds = array<i64: 1, 128>}]} {
    %c0 = arith.constant 0 : index
    %c0_0 = arith.constant 0 : index
    %0 = vector.load %arg1[%c0, %c0_0] : memref<32x128xf32, #tpu.memory_space<vmem>>, vector<32x128xf32>
    %c0_1 = arith.constant 0 : index
    %c0_2 = arith.constant 0 : index
    %1 = vector.load %arg2[%c0_1, %c0_2] : memref<32x128xf32, #tpu.memory_space<vmem>>, vector<32x128xf32>
    %c0_3 = arith.constant 0 : index
    %c0_4 = arith.constant 0 : index
    %2 = vector.load %arg3[%c0_3, %c0_4] : memref<32x32xf32, #tpu.memory_space<vmem>>, vector<32x32xf32>
    %c0_5 = arith.constant 0 : index
    %c0_6 = arith.constant 0 : index
    %3 = vector.load %arg4[%c0_5, %c0_6] : memref<32x32xf32, #tpu.memory_space<vmem>>, vector<32x32xf32>
    %c0_7 = arith.constant 0 : index
    %c0_8 = arith.constant 0 : index
    %4 = vector.load %arg5[%c0_7, %c0_8] : memref<32x1xf32, #tpu.memory_space<vmem>>, vector<32x1xf32>
    %c0_9 = arith.constant 0 : index
    %c0_10 = arith.constant 0 : index
    %5 = vector.load %arg6[%c0_9, %c0_10] : memref<32x1xf32, #tpu.memory_space<vmem>>, vector<32x1xf32>
    %cst = arith.constant dense<0.000000e+00> : vector<32x128xf32>
    %6 = tpu.matmul %2, %0, %cst {dimension_numbers = #tpu.dot_dimension_numbers<[1], [0], [0], [1], [0, 0, 1, 1], [], []>} : vector<32x32xf32>, vector<32x128xf32>, vector<32x128xf32> -> vector<32x128xf32>
    %cst_11 = arith.constant dense<0.000000e+00> : vector<32x128xf32>
    %7 = tpu.matmul %3, %1, %cst_11 {dimension_numbers = #tpu.dot_dimension_numbers<[1], [0], [0], [1], [0, 0, 1, 1], [], []>} : vector<32x32xf32>, vector<32x128xf32>, vector<32x128xf32> -> vector<32x128xf32>
    %cst_12 = arith.constant 0.000000e+00 : f32
    %8 = vector.broadcast %cst_12 : f32 to vector<32x128xf32>
    %9 = arith.maximumf %6, %8 : vector<32x128xf32>
    %cst_13 = arith.constant 0.000000e+00 : f32
    %10 = vector.broadcast %cst_13 : f32 to vector<32x128xf32>
    %11 = arith.maximumf %7, %10 : vector<32x128xf32>
    %12 = vector.broadcast %4 : vector<32x1xf32> to vector<32x128xf32>
    %13 = arith.mulf %9, %12 : vector<32x128xf32>
    %14 = vector.broadcast %5 : vector<32x1xf32> to vector<32x128xf32>
    %15 = arith.mulf %11, %14 : vector<32x128xf32>
    %16 = arith.addf %13, %15 : vector<32x128xf32>
    %cst_14 = arith.constant dense<0.000000e+00> : vector<128xf32>
    %17 = vector.multi_reduction <add>, %16, %cst_14 [0] : vector<32x128xf32> to vector<128xf32>
    %18 = vector.shape_cast %17 : vector<128xf32> to vector<1x128xf32>
    %c0_15 = arith.constant 0 : index
    %c0_16 = arith.constant 0 : index
    %19 = vector.load %arg7[%c0_15, %c0_16] : memref<1x128xf32, #tpu.memory_space<vmem>>, vector<1x128xf32>
    tpu.vector_store %arg7[%c0_15, %c0_16], %18 {strides = array<i32>} : memref<1x128xf32, #tpu.memory_space<vmem>>, vector<1x128xf32>,
    return
  }
  func.func @transform_0(%arg0: i32) -> (i32, i32) {
    %c0_i32 = arith.constant 0 : i32
    %c0_i32_0 = arith.constant 0 : i32
    return %c0_i32, %arg0 : i32, i32
  }
  func.func @transform_1(%arg0: i32) -> (i32, i32) {
    %c0_i32 = arith.constant 0 : i32
    %c0_i32_0 = arith.constant 0 : i32
    return %c0_i32, %arg0 : i32, i32
  }
  func.func @transform_2(%arg0: i32) -> (i32, i32) {
    %c0_i32 = arith.constant 0 : i32
    %c0_i32_0 = arith.constant 0 : i32
    %c0_i32_1 = arith.constant 0 : i32
    return %c0_i32, %c0_i32_0 : i32, i32
  }
  func.func @transform_3(%arg0: i32) -> (i32, i32) {
    %c0_i32 = arith.constant 0 : i32
    %c0_i32_0 = arith.constant 0 : i32
    %c0_i32_1 = arith.constant 0 : i32
    return %c0_i32, %c0_i32_0 : i32, i32
  }
  func.func @transform_4(%arg0: i32) -> (i32, i32) {
    %c0_i32 = arith.constant 0 : i32
    %c0_i32_0 = arith.constant 0 : i32
    %c0_i32_1 = arith.constant 0 : i32
    return %c0_i32, %c0_i32_0 : i32, i32
  }
  func.func @transform_5(%arg0: i32) -> (i32, i32) {
    %c0_i32 = arith.constant 0 : i32
    %c0_i32_0 = arith.constant 0 : i32
    %c0_i32_1 = arith.constant 0 : i32
    return %c0_i32, %c0_i32_0 : i32, i32
  }
  func.func @transform_6(%arg0: i32) -> (i32, i32) {
    %c0_i32 = arith.constant 0 : i32
    %c0_i32_0 = arith.constant 0 : i32
    return %c0_i32, %arg0 : i32, i32
  }
}

</mosaic_0001>

<llo_original>
// kernel: tpu_custom_call.1
$region0: #{tpu_custom_call.1}
  #allocation0 [shape = 'u32[]', space=smem, size = 0x4, offset = 0x4, fixed_abs, tag = 'smem constant byte address 0x4 - core index']
  #allocation1 [shape = 'u32[144,128]{1,0:T(1,128)}', space=vmem, size = 0x12000, scoped, tag = 'internal scratch']
  %s0 = inlined_call_operand.vmem [shape: f32[32,128], index: 0, kind: input, shape index: {}]
  %s1 = inlined_call_operand.vmem [shape: f32[32,128], index: 1, kind: input, shape index: {}]
  %s2 = inlined_call_operand.hbm [shape: f32[32,32], index: 2, kind: input, shape index: {}]
  %s3 = inlined_call_operand.hbm [shape: f32[32,32], index: 3, kind: input, shape index: {}]
  %s4 = inlined_call_operand.vmem [shape: f32[32,1], index: 4, kind: input, shape index: {}]
  %s5 = inlined_call_operand.vmem [shape: f32[32,1], index: 5, kind: input, shape index: {}]
  %s6 = inlined_call_operand.hbm [shape: f32[1,128], index: 6, kind: output, shape index: {}]
  %s7 = sld [smem:[#allocation0]]
  $region42: #{tpu_custom_call.1} parent=0
    _
  %s9 = ssub.s32 1, %s7
  %s10 = scalar_select 0, %s9, %s7
  $region1: #{tpu_custom_call.1} parent=0
    #allocation2 [shape = 'u8[16384]{0}', space=vmem, size = 0x4000, scoped, tag = 'input window, operand 2, single buffered']
    #allocation3 [shape = 's32[1]{0}', space=sflag, size = 0x4, scoped, tag = 'scoped memory for tpu_custom_call.1']
    #allocation4 [shape = 's32[1]{0}', space=sflag, size = 0x4, scoped, tag = 'scoped memory for tpu_custom_call.1']
    #allocation5 [shape = 'u8[16384]{0}', space=vmem, size = 0x4000, scoped, tag = 'input window, operand 3, single buffered']
    #allocation6 [shape = 's32[1]{0}', space=sflag, size = 0x4, scoped, tag = 'scoped memory for tpu_custom_call.1']
    #allocation7 [shape = 'u8[512]{0}', space=vmem, size = 0x400, scoped, tag = 'output window, operand 0, single buffered']
    %11 = vsyncpa [#allocation3], 0
    %12 = vsyncpa [#allocation6], 0
    %13 = vsyncpa [#allocation4], 0
    // Predicated region
    $region2: #{tpu_custom_call.1} parent=1 // pred_check
      _
    $region3: #{tpu_custom_call.1} parent=1 // pred_check_branch
      %15 = sbr.rel (0) target = $region5
    $region4: #{tpu_custom_call.1} parent=1 // pred_region
      _
    $region5: #{tpu_custom_call.1} parent=1 // pred_fallthru
      _
    // Predicated region
    $region6: #{tpu_custom_call.1} parent=1 // pred_check
      _
    $region7: #{tpu_custom_call.1} parent=1 // pred_check_branch
      %17 = sbr.rel (0) target = $region9
    $region8: #{tpu_custom_call.1} parent=1 // pred_region
      _
    $region9: #{tpu_custom_call.1} parent=1 // pred_fallthru
      _
    // Predicated region
    $region10: #{tpu_custom_call.1} parent=1 // pred_check
      _
    $region11: #{tpu_custom_call.1} parent=1 // pred_check_branch
      %19 = sbr.rel (0) target = $region13
    $region12: #{tpu_custom_call.1} parent=1 // pred_region
      %s21 = ssub.s32 512, 512
      %22 = vsyncadd [#allocation3], %s21
      %s23 = sshll.u32 [#allocation2], 4
      %s24 = int_to_ptr.vmem [resolvable:$true] %s23
      %29 = dma.hbm_to_vmem [thread:$0]  %s2, 512, %s24, [#allocation3], 128, 128, 8
    $region13: #{tpu_custom_call.1} parent=1 // pred_fallthru
      _
    // Predicated region
    $region14: #{tpu_custom_call.1} parent=1 // pred_check
      _
    $region15: #{tpu_custom_call.1} parent=1 // pred_check_branch
      %31 = sbr.rel (0) target = $region17
    $region16: #{tpu_custom_call.1} parent=1 // pred_region
      %s33 = ssub.s32 512, 512
      %34 = vsyncadd [#allocation6], %s33
      %s35 = sshll.u32 [#allocation5], 4
      %s36 = int_to_ptr.vmem [resolvable:$true] %s35
      %41 = dma.hbm_to_vmem [thread:$0]  %s3, 512, %s36, [#allocation6], 128, 128, 8
    $region17: #{tpu_custom_call.1} parent=1 // pred_fallthru
      _
    // Predicated region
    $region18: #{tpu_custom_call.1} parent=1 // pred_check
      _
    $region19: #{tpu_custom_call.1} parent=1 // pred_check_branch
      %43 = sbr.rel (0) target = $region21
    $region20: #{tpu_custom_call.1} parent=1 // pred_region
      _
    $region21: #{tpu_custom_call.1} parent=1 // pred_fallthru
      _
    // Predicated region
    $region22: #{tpu_custom_call.1} parent=1 // pred_check
      _
    $region23: #{tpu_custom_call.1} parent=1 // pred_check_branch
      %45 = sbr.rel (0) target = $region25
    $region24: #{tpu_custom_call.1} parent=1 // pred_region
      _
    $region25: #{tpu_custom_call.1} parent=1 // pred_fallthru
      _
    // Predicated region
    $region26: #{tpu_custom_call.1} parent=1 // pred_check
      _
    $region27: #{tpu_custom_call.1} parent=1 // pred_check_branch
      %47 = sbr.rel (0) target = $region29
    $region28: #{tpu_custom_call.1} parent=1 // pred_region
      %48 = dma.done [#allocation3], 512
    $region29: #{tpu_custom_call.1} parent=1 // pred_fallthru
      _
    // Predicated region
    $region30: #{tpu_custom_call.1} parent=1 // pred_check
      _
    $region31: #{tpu_custom_call.1} parent=1 // pred_check_branch
      %50 = sbr.rel (0) target = $region33
    $region32: #{tpu_custom_call.1} parent=1 // pred_region
      %51 = dma.done [#allocation6], 512
    $region33: #{tpu_custom_call.1} parent=1 // pred_fallthru
      _
    %v52 = vld [vmem:[%s0] sm:$0xff]
    %v53 = vld [vmem:[%s0 + $0x8] sm:$0xff]
    %v54 = vld [vmem:[%s0 + $0x10] sm:$0xff]
    %v55 = vld [vmem:[%s0 + $0x18] sm:$0xff]
    %v56 = vld [vmem:[%s1] sm:$0xff]
    %v57 = vld [vmem:[%s1 + $0x8] sm:$0xff]
    %v58 = vld [vmem:[%s1 + $0x10] sm:$0xff]
    %v59 = vld [vmem:[%s1 + $0x18] sm:$0xff]
    %v60 = vld [vmem:[#allocation2] sm:$0xff]
    %v61 = vld [vmem:[#allocation2 + $0x8] sm:$0xff]
    %v62 = vld [vmem:[#allocation2 + $0x10] sm:$0xff]
    %v63 = vld [vmem:[#allocation2 + $0x18] sm:$0xff]
    %v64 = vld [vmem:[#allocation5] sm:$0xff]
    %v65 = vld [vmem:[#allocation5 + $0x8] sm:$0xff]
    %v66 = vld [vmem:[#allocation5 + $0x10] sm:$0xff]
    %v67 = vld [vmem:[#allocation5 + $0x18] sm:$0xff]
    %v68 = vld [vmem:[%s4] sm:$0xff]
    %v69 = vld [vmem:[%s4 + $0x8] sm:$0xff]
    %v70 = vld [vmem:[%s4 + $0x10] sm:$0xff]
    %v71 = vld [vmem:[%s4 + $0x18] sm:$0xff]
    %v72 = vld [vmem:[%s5] sm:$0xff]
    %v73 = vld [vmem:[%s5 + $0x8] sm:$0xff]
    %v74 = vld [vmem:[%s5 + $0x10] sm:$0xff]
    %v75 = vld [vmem:[%s5 + $0x18] sm:$0xff]
    %vm76 = vcmask 261120
    %v78 = vsel %vm76, %v60, 0
    %v81 = vsel %vm76, %v61, 0
    %v84 = vsel %vm76, %v62, 0
    %v87 = vsel %vm76, %v63, 0
    %89 = vmatprep.subr.mxu0 0.0
    %90 = vmatpush1.msra.mxu0 %v52
    %91 = vmatprep.subr.mxu0 0.0
    %92 = vmatpush1.msra.mxu0 %v53
    %93 = vmatprep.subr.mxu0 0.0
    %94 = vmatpush1.msra.mxu0 %v54
    %95 = vmatprep.subr.mxu0 0.0
    %96 = vmatpush1.msra.mxu0 %v55
    %97 = vmatprep.subr.mxu0 0.0
    %98 = vmatpush1.msra.mxu0 0.0
    %99 = vmatprep.subr.mxu0 0.0
    %100 = vmatpush1.msra.mxu0 0.0
    %101 = vmatprep.subr.mxu0 0.0
    %102 = vmatpush1.msra.mxu0 0.0
    %103 = vmatprep.subr.mxu0 0.0
    %104 = vmatpush1.msra.mxu0 0.0
    %105 = vmatprep.subr.mxu0 0.0
    %106 = vmatpush1.msra.mxu0 0.0
    %107 = vmatprep.subr.mxu0 0.0
    %108 = vmatpush1.msra.mxu0 0.0
    %109 = vmatprep.subr.mxu0 0.0
    %110 = vmatpush1.msra.mxu0 0.0
    %111 = vmatprep.subr.mxu0 0.0
    %112 = vmatpush1.msra.mxu0 0.0
    %113 = vmatprep.subr.mxu0 0.0
    %114 = vmatpush1.msra.mxu0 0.0
    %115 = vmatprep.subr.mxu0 0.0
    %116 = vmatpush1.msra.mxu0 0.0
    %117 = vmatprep.subr.mxu0 0.0
    %118 = vmatpush1.msra.mxu0 0.0
    %119 = vmatprep.subr.mxu0 0.0
    %120 = vmatpush1.msra.mxu0 0.0
    %121 = vmatprep.subr.mxu0 0.0
    %122 = vmatpush1.msra.mxu0 0.0
    %123 = vmatprep.subr.mxu0 0.0
    %124 = vmatpush1.msra.mxu0 0.0
    %125 = vmatprep.subr.mxu0 0.0
    %126 = vmatpush1.msra.mxu0 0.0
    %127 = vmatprep.subr.mxu0 0.0
    %128 = vmatpush1.msra.mxu0 0.0
    %129 = vmatprep.subr.mxu0 0.0
    %130 = vmatpush1.msra.mxu0 0.0
    %131 = vmatprep.subr.mxu0 0.0
    %132 = vmatpush1.msra.mxu0 0.0
    %133 = vmatprep.subr.mxu0 0.0
    %134 = vmatpush1.msra.mxu0 0.0
    %135 = vmatprep.subr.mxu0 0.0
    %136 = vmatpush1.msra.mxu0 0.0
    %137 = vmatprep.subr.mxu0 0.0
    %138 = vmatpush1.msra.mxu0 0.0
    %139 = vmatprep.subr.mxu0 0.0
    %140 = vmatpush1.msra.mxu0 0.0
    %141 = vmatprep.subr.mxu0 0.0
    %142 = vmatpush1.msra.mxu0 0.0
    %143 = vmatprep.subr.mxu0 0.0
    %144 = vmatpush1.msra.mxu0 0.0
    %145 = vmatprep.subr.mxu0 0.0
    %146 = vmatpush1.msra.mxu0 0.0
    %147 = vmatprep.subr.mxu0 0.0
    %148 = vmatpush1.msra.mxu0 0.0
    %149 = vmatprep.subr.mxu0 0.0
    %150 = vmatpush1.msra.mxu0 0.0
    %151 = vmatprep.subr.mxu0 0.0
    %152 = vmatpush1.msra.mxu0 0.0
    %153 = vmatprep.mubr.f32.mxu0 0.0
    %154 = vmatmul.mubr.f32.gmra.mrb[0].mxu0 %v78
    %v155 = vpop.f32.mrb[0].mxu0
    %v156 = vadd.f32 0.0, %v155
    %v157 = vpop.f32.mrb[0].mxu0
    %158 = vmatprep.mubr.f32.mxu0 0.0
    %159 = vmatmul.mubr.f32.gmra.mrb[0].mxu0 %v81
    %v160 = vpop.f32.mrb[0].mxu0
    %v161 = vadd.f32 0.0, %v160
    %v162 = vpop.f32.mrb[0].mxu0
    %163 = vmatprep.mubr.f32.mxu0 0.0
    %164 = vmatmul.mubr.f32.gmra.mrb[0].mxu0 %v84
    %v165 = vpop.f32.mrb[0].mxu0
    %v166 = vadd.f32 0.0, %v165
    %v167 = vpop.f32.mrb[0].mxu0
    %168 = vmatprep.mubr.f32.mxu0 0.0
    %169 = vmatmul.mubr.f32.gmra.mrb[0].mxu0 %v87
    %v170 = vpop.f32.mrb[0].mxu0
    %v171 = vadd.f32 0.0, %v170
    %v172 = vpop.f32.mrb[0].mxu0
    %173 = vdwg.mxu0
    %v175 = vsel %vm76, %v64, 0
    %v178 = vsel %vm76, %v65, 0
    %v181 = vsel %vm76, %v66, 0
    %v184 = vsel %vm76, %v67, 0
    %186 = vmatprep.subr.mxu0 0.0
    %187 = vmatpush1.msra.mxu0 %v56
    %188 = vmatprep.subr.mxu0 0.0
    %189 = vmatpush1.msra.mxu0 %v57
    %190 = vmatprep.subr.mxu0 0.0
    %191 = vmatpush1.msra.mxu0 %v58
    %192 = vmatprep.subr.mxu0 0.0
    %193 = vmatpush1.msra.mxu0 %v59
    %194 = vmatprep.subr.mxu0 0.0
    %195 = vmatpush1.msra.mxu0 0.0
    %196 = vmatprep.subr.mxu0 0.0
    %197 = vmatpush1.msra.mxu0 0.0
    %198 = vmatprep.subr.mxu0 0.0
    %199 = vmatpush1.msra.mxu0 0.0
    %200 = vmatprep.subr.mxu0 0.0
    %201 = vmatpush1.msra.mxu0 0.0
    %202 = vmatprep.subr.mxu0 0.0
    %203 = vmatpush1.msra.mxu0 0.0
    %204 = vmatprep.subr.mxu0 0.0
    %205 = vmatpush1.msra.mxu0 0.0
    %206 = vmatprep.subr.mxu0 0.0
    %207 = vmatpush1.msra.mxu0 0.0
    %208 = vmatprep.subr.mxu0 0.0
    %209 = vmatpush1.msra.mxu0 0.0
    %210 = vmatprep.subr.mxu0 0.0
    %211 = vmatpush1.msra.mxu0 0.0
    %212 = vmatprep.subr.mxu0 0.0
    %213 = vmatpush1.msra.mxu0 0.0
    %214 = vmatprep.subr.mxu0 0.0
    %215 = vmatpush1.msra.mxu0 0.0
    %216 = vmatprep.subr.mxu0 0.0
    %217 = vmatpush1.msra.mxu0 0.0
    %218 = vmatprep.subr.mxu0 0.0
    %219 = vmatpush1.msra.mxu0 0.0
    %220 = vmatprep.subr.mxu0 0.0
    %221 = vmatpush1.msra.mxu0 0.0
    %222 = vmatprep.subr.mxu0 0.0
    %223 = vmatpush1.msra.mxu0 0.0
    %224 = vmatprep.subr.mxu0 0.0
    %225 = vmatpush1.msra.mxu0 0.0
    %226 = vmatprep.subr.mxu0 0.0
    %227 = vmatpush1.msra.mxu0 0.0
    %228 = vmatprep.subr.mxu0 0.0
    %229 = vmatpush1.msra.mxu0 0.0
    %230 = vmatprep.subr.mxu0 0.0
    %231 = vmatpush1.msra.mxu0 0.0
    %232 = vmatprep.subr.mxu0 0.0
    %233 = vmatpush1.msra.mxu0 0.0
    %234 = vmatprep.subr.mxu0 0.0
    %235 = vmatpush1.msra.mxu0 0.0
    %236 = vmatprep.subr.mxu0 0.0
    %237 = vmatpush1.msra.mxu0 0.0
    %238 = vmatprep.subr.mxu0 0.0
    %239 = vmatpush1.msra.mxu0 0.0
    %240 = vmatprep.subr.mxu0 0.0
    %241 = vmatpush1.msra.mxu0 0.0
    %242 = vmatprep.subr.mxu0 0.0
    %243 = vmatpush1.msra.mxu0 0.0
    %244 = vmatprep.subr.mxu0 0.0
    %245 = vmatpush1.msra.mxu0 0.0
    %246 = vmatprep.subr.mxu0 0.0
    %247 = vmatpush1.msra.mxu0 0.0
    %248 = vmatprep.subr.mxu0 0.0
    %249 = vmatpush1.msra.mxu0 0.0
    %250 = vmatprep.mubr.f32.mxu0 0.0
    %251 = vmatmul.mubr.f32.gmra.mrb[0].mxu0 %v175
    %v252 = vpop.f32.mrb[0].mxu0
    %v253 = vadd.f32 0.0, %v252
    %v254 = vpop.f32.mrb[0].mxu0
    %255 = vmatprep.mubr.f32.mxu0 0.0
    %256 = vmatmul.mubr.f32.gmra.mrb[0].mxu0 %v178
    %v257 = vpop.f32.mrb[0].mxu0
    %v258 = vadd.f32 0.0, %v257
    %v259 = vpop.f32.mrb[0].mxu0
    %260 = vmatprep.mubr.f32.mxu0 0.0
    %261 = vmatmul.mubr.f32.gmra.mrb[0].mxu0 %v181
    %v262 = vpop.f32.mrb[0].mxu0
    %v263 = vadd.f32 0.0, %v262
    %v264 = vpop.f32.mrb[0].mxu0
    %265 = vmatprep.mubr.f32.mxu0 0.0
    %266 = vmatmul.mubr.f32.gmra.mrb[0].mxu0 %v184
    %v267 = vpop.f32.mrb[0].mxu0
    %v268 = vadd.f32 0.0, %v267
    %v269 = vpop.f32.mrb[0].mxu0
    %270 = vdwg.mxu0
    %v271 = vmax.f32 %v156, 0.0
    %v272 = vmax.f32 %v161, 0.0
    %v273 = vmax.f32 %v166, 0.0
    %v274 = vmax.f32 %v171, 0.0
    %v275 = vmax.f32 %v253, 0.0
    %v276 = vmax.f32 %v258, 0.0
    %v277 = vmax.f32 %v263, 0.0
    %v278 = vmax.f32 %v268, 0.0
    %280 = vset.pattern.permute.xlu0 0
    %281 = vperm.xlu0 %280, %v68
    %v282 = vpop.permute.xlu0 %281
    %285 = vset.pattern.permute.xlu0 0
    %286 = vperm.xlu0 %285, %v69
    %v287 = vpop.permute.xlu0 %286
    %290 = vset.pattern.permute.xlu0 0
    %291 = vperm.xlu0 %290, %v70
    %v292 = vpop.permute.xlu0 %291
    %295 = vset.pattern.permute.xlu0 0
    %296 = vperm.xlu0 %295, %v71
    %v297 = vpop.permute.xlu0 %296
    %v299 = vmul.f32 %v271, %v282
    %v300 = vmul.f32 %v272, %v287
    %v301 = vmul.f32 %v273, %v292
    %v302 = vmul.f32 %v274, %v297
    %304 = vset.pattern.permute.xlu0 0
    %305 = vperm.xlu0 %304, %v72
    %v306 = vpop.permute.xlu0 %305
    %309 = vset.pattern.permute.xlu0 0
    %310 = vperm.xlu0 %309, %v73
    %v311 = vpop.permute.xlu0 %310
    %314 = vset.pattern.permute.xlu0 0
    %315 = vperm.xlu0 %314, %v74
    %v316 = vpop.permute.xlu0 %315
    %319 = vset.pattern.permute.xlu0 0
    %320 = vperm.xlu0 %319, %v75
    %v321 = vpop.permute.xlu0 %320
    %v323 = vmul.f32 %v275, %v306
    %v324 = vmul.f32 %v276, %v311
    %v325 = vmul.f32 %v277, %v316
    %v326 = vmul.f32 %v278, %v321
    %v327 = vadd.f32 %v299, %v323
    %v328 = vadd.f32 %v300, %v324
    %v329 = vadd.f32 %v301, %v325
    %v330 = vadd.f32 %v302, %v326
    %v331 = vadd.f32 %v327, %v328
    %v332 = vadd.f32 %v331, %v329
    %v333 = vadd.f32 %v332, %v330
    %v334 = vrot.slane %v333, 4
    %v335 = vadd.f32 %v333, %v334
    %v336 = vrot.slane %v335, 2
    %v337 = vadd.f32 %v335, %v336
    %v338 = vrot.slane %v337, 1
    %v339 = vadd.f32 %v337, %v338
    %340 = vst [vmem:[#allocation7] sm:$0x1] %v339
    // Predicated region
    $region34: #{tpu_custom_call.1} parent=1 // pred_check
      _
    $region35: #{tpu_custom_call.1} parent=1 // pred_check_branch
      %342 = sbr.rel (0) target = $region37
    $region36: #{tpu_custom_call.1} parent=1 // pred_region
      %s344 = ssub.s32 16, 16
      %345 = vsyncadd [#allocation4], %s344
      %s347 = sshll.u32 [#allocation7], 4
      %s348 = int_to_ptr.vmem [resolvable:$true] %s347
      %350 = dma.vmem_to_hbm [thread:$0]  %s348, 16, %s6, [#allocation4]
    $region37: #{tpu_custom_call.1} parent=1 // pred_fallthru
      _
    // Predicated region
    $region38: #{tpu_custom_call.1} parent=1 // pred_check
      _
    $region39: #{tpu_custom_call.1} parent=1 // pred_check_branch
      %352 = sbr.rel (0) target = $region41
    $region40: #{tpu_custom_call.1} parent=1 // pred_region
      %353 = dma.done [#allocation4], 16
    $region41: #{tpu_custom_call.1} parent=1 // pred_fallthru
      _
    %354 = vsyncpa [#allocation3], 1
    %355 = vsyncpa [#allocation6], 1
    %356 = vsyncpa [#allocation4], 1

</llo_original>
